<compile_context>
chip_gen: v5e
topology: v5e:2x2
jax: 0.10.0
libtpu: 0.0.40
codegen_flags: <defaults>
</compile_context>

<pallas_src>
import jax
import jax.numpy as jnp
from jax.experimental import pallas as pl
from jax.experimental.pallas import tpu as pltpu


def _round_up(n, m):
    return ((n + m - 1) // m) * m


def _mlp_kernel(x_ref, w1_ref, b1_ref, w2_ref, o_ref):
    # hidden = relu(x @ W1p + b1p)            [TB, 128]   (MXU, f32 accumulate)
    h = jnp.dot(x_ref[...], w1_ref[...], preferred_element_type=jnp.float32)
    h = jnp.maximum(h + b1_ref[...], 0.0)
    # out = sum(h * w2p_row, -1)              [TB]        (VPU mul + XLU lane reduce;
    # b2 is already folded into one padded hidden column, so no scalar add needed)
    y = jnp.sum(h * w2_ref[...], axis=-1)
    # lane-dense store: one [1, TB] row per grid step
    o_ref[...] = y.astype(o_ref.dtype)[None, :]


_VMEM_LIMIT = 32 * 1024 * 1024          # explicit scoped-VMEM request (safe on v5e/v6e/v7x)
_VMEM_BUDGET = 24 * 1024 * 1024         # kernel footprint target (headroom for compiler scratch)


def _choose_tile_b(B, D, itemsize):
    """Pick (tile_b, num_blocks) for the batch grid.

    VMEM model (per batch row): 2 double-buffered x rows at lane-padded width
    round_up(D,128), ~3 f32 [.,128] temps (h, h*w2, slack), output row.  Plus the
    fixed, double-buffered resident weights.  Keeps total <= ~24 MiB and prefers
    >=4 grid steps (v7x megacore) with tile_b a multiple of 128 (lane-dense output).
    """
    Dp = _round_up(D, 128)
    per_row = 2 * Dp * itemsize + 3 * 128 * 4 + 2 * 8 * 4
    fixed = 2 * _round_up(D, 8) * 128 * max(itemsize, 4) + 4 * 8 * 128 * 4
    cap = (_VMEM_BUDGET - fixed) // per_row
    cap = max(128, (cap // 128) * 128)          # multiple of 128; see TODO above for huge D
    cap = min(cap, 8192)                        # plenty to amortise the ~0.35 us step overhead

    if B < 256:
        # Tiny batch: one block equal to the full array dims (always spec-compliant).
        return B, 1

    tb = min(cap, max(128, ((B // 4) // 128) * 128))   # aim for >=4 tiles when possible
    nb = pl.cdiv(B, tb)
    return tb, nb


def my_covid19_forward(x, w1, b1, w2, b2):
    """x: [B, D] -> [B] float32.

    Weights are stored transposed vs. PyTorch ([in, out]): w1:[D,H], b1:[1,H],
    w2:[H,1], b2:[1,1], so the kernel does a plain x @ W matmul on the MXU.
    x and w1 may be float32 or bfloat16 (store them in bf16 upstream if you want the
    HBM saving); accumulation and the epilogue are always float32.
    """
    B, D = x.shape
    H = w1.shape[1]
    Hp = _round_up(max(H + 1, 128), 128)   # pad hidden to full lane width (+1 spare col for b2)

    # Zero-pad the hidden dim; padded columns of w1 are 0 so they stay 0 through ReLU,
    # except column H which is the folded bias unit: b1=1.0, w1_col=0 -> relu(1.0)=1.0,
    # and w2[H]=b2, so it contributes exactly b2 to the reduce.
    w1p = jnp.pad(w1, ((0, 0), (0, Hp - H)))
    b1p = (jnp.zeros((1, Hp), jnp.float32)
           .at[:, :H].set(b1.reshape(1, H).astype(jnp.float32))
           .at[:, H].set(1.0))
    w2p = (jnp.zeros((1, Hp), jnp.float32)
           .at[:, :H].set(w2.reshape(1, H).astype(jnp.float32))
           .at[:, H].set(b2.reshape(()).astype(jnp.float32)))

    tb, nb = _choose_tile_b(B, D, jnp.dtype(x.dtype).itemsize)
    Bp = nb * tb  # virtual (lane-dense) output width; last x block may be ragged

    out = pl.pallas_call(
        _mlp_kernel,
        out_shape=jax.ShapeDtypeStruct((1, Bp), jnp.float32),
        grid_spec=pltpu.PrefetchScalarGridSpec(
            num_scalar_prefetch=0,
            grid=(nb,),
            in_specs=[
                pl.BlockSpec((tb, D), lambda i: (i, 0)),    # x: tiled over batch (ragged tail OK)
                pl.BlockSpec((D, Hp), lambda i: (0, 0)),    # w1: VMEM-resident (DMA'd once)
                pl.BlockSpec((1, Hp), lambda i: (0, 0)),    # b1 row (with folded bias unit)
                pl.BlockSpec((1, Hp), lambda i: (0, 0)),    # w2 row (with folded b2)
            ],
            out_specs=pl.BlockSpec((1, tb), lambda i: (0, i)),  # lane-dense (1, Bp) row
        ),
        compiler_params=pltpu.CompilerParams(
            dimension_semantics=("parallel",),          # batch tiles are independent (megacore)
            vmem_limit_bytes=_VMEM_LIMIT,
        ),
    )(x, w1p, b1p, w2p)

    # (1, Bp) -> (B,): pure reshape + slice (drops the garbage rows of the ragged tail).
    return out.reshape(-1)[:B]


def init_params(input_dim, hidden=64, seed=0):
    """Deterministic synthetic init (shapes match nn.Linear(input_dim,64), nn.Linear(64,1))."""
    k1, k2, k3, k4 = jax.random.split(jax.random.PRNGKey(seed), 4)
    s1 = 1.0 / jnp.sqrt(input_dim)
    s2 = 1.0 / jnp.sqrt(hidden)
    w1 = jax.random.uniform(k1, (input_dim, hidden), jnp.float32, -s1, s1)
    b1 = jax.random.uniform(k2, (1, hidden), jnp.float32, -s1, s1)
    w2 = jax.random.uniform(k3, (hidden, 1), jnp.float32, -s2, s2)
    b2 = jax.random.uniform(k4, (1, 1), jnp.float32, -s2, s2)
    return w1, b1, w2, b2


def _ref_forward(x, w1, b1, w2, b2):
    return (jnp.maximum(x @ w1 + b1, 0.0) @ w2 + b2)[:, 0]


if __name__ == "__main__":
    D, H = 16, 64
    w1, b1, w2, b2 = init_params(D, hidden=H, seed=0)
    key = jax.random.PRNGKey(0)
    k_small, k_big = jax.random.split(key)

    # 1) Tiny batch, single full-array block, f32.
    B = 8
    x = jax.random.normal(k_small, (B, D), jnp.float32)
    y = jax.block_until_ready(my_covid19_forward(x, w1, b1, w2, b2))
    ref = _ref_forward(x, w1, b1, w2, b2)
    assert y.shape == (B,)
    assert jnp.allclose(y, ref, atol=1e-4, rtol=1e-4)

    # 2) Larger batch exercising the tiled + ragged-last-block path, f32.
    B2 = 300
    x2 = jax.random.normal(k_big, (B2, D), jnp.float32)
    y2 = jax.block_until_ready(my_covid19_forward(x2, w1, b1, w2, b2))
    ref2 = _ref_forward(x2, w1, b1, w2, b2)
    assert y2.shape == (B2,)
    assert jnp.allclose(y2, ref2, atol=1e-4, rtol=1e-4)

    # 3) bf16-stored inputs (no wrapper cast): halves x/w1 HBM traffic; f32 accumulate/epilogue.
    xb = x.astype(jnp.bfloat16)
    w1b = w1.astype(jnp.bfloat16)
    y_bf = jax.block_until_ready(my_covid19_forward(xb, w1b, b1, w2, b2))
    ref_bf = _ref_forward(xb.astype(jnp.float32), w1b.astype(jnp.float32), b1, w2, b2)
    assert jnp.allclose(y_bf, ref_bf, atol=1e-2, rtol=1e-2)

    print("KERNEL_OK")
</pallas_src>

<mosaic_0001>
module attributes {stable_mosaic.version = 11 : i64} {
  func.func @_mlp_kernel(%arg0: i32, %arg1: memref<8x16xf32, #tpu.memory_space<vmem>>, %arg2: memref<16x128xf32, #tpu.memory_space<vmem>>, %arg3: memref<1x128xf32, #tpu.memory_space<vmem>>, %arg4: memref<1x128xf32, #tpu.memory_space<vmem>>, %arg5: memref<1x8xf32, #tpu.memory_space<vmem>>) attributes {dimension_semantics = [#tpu.dimension_semantics<parallel>], iteration_bounds = array<i64: 1>, scalar_prefetch = 0 : i64, scratch_operands = 0 : i64, tpu.core_type = #tpu.core_type<tc>, window_params = [{transform_indices = @transform_0, window_bounds = array<i64: 8, 16>}, {pipeline_mode = #tpu.pipeline_mode<synchronous>, transform_indices = @transform_1, window_bounds = array<i64: 16, 128>}, {pipeline_mode = #tpu.pipeline_mode<synchronous>, transform_indices = @transform_2, window_bounds = array<i64: 1, 128>}, {pipeline_mode = #tpu.pipeline_mode<synchronous>, transform_indices = @transform_3, window_bounds = array<i64: 1, 128>}, {transform_indices = @transform_4, window_bounds = array<i64: 1, 8>}]} {
    %c0 = arith.constant 0 : index
    %c0_0 = arith.constant 0 : index
    %0 = vector.load %arg1[%c0, %c0_0] : memref<8x16xf32, #tpu.memory_space<vmem>>, vector<8x16xf32>
    %c0_1 = arith.constant 0 : index
    %c0_2 = arith.constant 0 : index
    %1 = vector.load %arg2[%c0_1, %c0_2] : memref<16x128xf32, #tpu.memory_space<vmem>>, vector<16x128xf32>
    %cst = arith.constant dense<0.000000e+00> : vector<8x128xf32>
    %2 = tpu.matmul %0, %1, %cst {dimension_numbers = #tpu.dot_dimension_numbers<[1], [0], [0], [1], [0, 0, 1, 1], [], []>} : vector<8x16xf32>, vector<16x128xf32>, vector<8x128xf32> -> vector<8x128xf32>
    %c0_3 = arith.constant 0 : index
    %c0_4 = arith.constant 0 : index
    %3 = vector.load %arg3[%c0_3, %c0_4] : memref<1x128xf32, #tpu.memory_space<vmem>>, vector<1x128xf32>
    %4 = vector.broadcast %3 : vector<1x128xf32> to vector<8x128xf32>
    %5 = arith.addf %2, %4 : vector<8x128xf32>
    %cst_5 = arith.constant 0.000000e+00 : f32
    %6 = vector.broadcast %cst_5 : f32 to vector<8x128xf32>
    %7 = arith.maximumf %5, %6 : vector<8x128xf32>
    %c0_6 = arith.constant 0 : index
    %c0_7 = arith.constant 0 : index
    %8 = vector.load %arg4[%c0_6, %c0_7] : memref<1x128xf32, #tpu.memory_space<vmem>>, vector<1x128xf32>
    %9 = vector.broadcast %8 : vector<1x128xf32> to vector<8x128xf32>
    %10 = arith.mulf %7, %9 : vector<8x128xf32>
    %cst_8 = arith.constant dense<0.000000e+00> : vector<8xf32>
    %11 = vector.multi_reduction <add>, %10, %cst_8 [1] : vector<8x128xf32> to vector<8xf32>
    %12 = vector.shape_cast %11 : vector<8xf32> to vector<1x8xf32>
    %c0_9 = arith.constant 0 : index
    %c0_10 = arith.constant 0 : index
    %13 = vector.load %arg5[%c0_9, %c0_10] : memref<1x8xf32, #tpu.memory_space<vmem>>, vector<1x8xf32>
    tpu.vector_store %arg5[%c0_9, %c0_10], %12 {strides = array<i32>} : memref<1x8xf32, #tpu.memory_space<vmem>>, vector<1x8xf32>,
    return
  }
  func.func @transform_0(%arg0: i32) -> (i32, i32) {
    %c0_i32 = arith.constant 0 : i32
    %c0_i32_0 = arith.constant 0 : i32
    return %arg0, %c0_i32 : i32, i32
  }
  func.func @transform_1(%arg0: i32) -> (i32, i32) {
    %c0_i32 = arith.constant 0 : i32
    %c0_i32_0 = arith.constant 0 : i32
    %c0_i32_1 = arith.constant 0 : i32
    return %c0_i32, %c0_i32_0 : i32, i32
  }
  func.func @transform_2(%arg0: i32) -> (i32, i32) {
    %c0_i32 = arith.constant 0 : i32
    %c0_i32_0 = arith.constant 0 : i32
    %c0_i32_1 = arith.constant 0 : i32
    return %c0_i32, %c0_i32_0 : i32, i32
  }
  func.func @transform_3(%arg0: i32) -> (i32, i32) {
    %c0_i32 = arith.constant 0 : i32
    %c0_i32_0 = arith.constant 0 : i32
    %c0_i32_1 = arith.constant 0 : i32
    return %c0_i32, %c0_i32_0 : i32, i32
  }
  func.func @transform_4(%arg0: i32) -> (i32, i32) {
    %c0_i32 = arith.constant 0 : i32
    %c0_i32_0 = arith.constant 0 : i32
    return %c0_i32, %arg0 : i32, i32
  }
}

</mosaic_0001>

<llo_original>
// kernel: tpu_custom_call.1
$region0: #{tpu_custom_call.1}
  #allocation0 [shape = 'u32[]', space=smem, size = 0x4, offset = 0x4, fixed_abs, tag = 'smem constant byte address 0x4 - core index']
  #allocation1 [shape = 'u32[72,128]{1,0:T(1,128)}', space=vmem, size = 0x9000, scoped, tag = 'internal scratch']
  %s0 = inlined_call_operand.hbm [shape: f32[8,16], index: 0, kind: input, shape index: {}]
  %s1 = inlined_call_operand.hbm [shape: f32[16,128], index: 1, kind: input, shape index: {}]
  %s2 = inlined_call_operand.vmem [shape: f32[1,128], index: 2, kind: input, shape index: {}]
  %s3 = inlined_call_operand.vmem [shape: f32[1,128], index: 3, kind: input, shape index: {}]
  %s4 = inlined_call_operand.hbm [shape: f32[1,8], index: 4, kind: output, shape index: {}]
  %s5 = sld [smem:[#allocation0]]
  $region34: #{tpu_custom_call.1} parent=0
    _
  %s7 = ssub.s32 1, %s5
  %s8 = scalar_select 0, %s7, %s5
  $region1: #{tpu_custom_call.1} parent=0
    #allocation2 [shape = 'u8[4096]{0}', space=vmem, size = 0x1000, scoped, tag = 'input window, operand 0, single buffered']
    #allocation3 [shape = 's32[1]{0}', space=sflag, size = 0x4, scoped, tag = 'scoped memory for tpu_custom_call.1']
    #allocation4 [shape = 's32[1]{0}', space=sflag, size = 0x4, scoped, tag = 'scoped memory for tpu_custom_call.1']
    #allocation5 [shape = 'u8[8192]{0}', space=vmem, size = 0x2000, scoped, tag = 'input window, operand 1, single buffered']
    #allocation6 [shape = 's32[1]{0}', space=sflag, size = 0x4, scoped, tag = 'scoped memory for tpu_custom_call.1']
    #allocation7 [shape = 'u8[512]{0}', space=vmem, size = 0x400, scoped, tag = 'output window, operand 0, single buffered']
    %9 = vsyncpa [#allocation3], 0
    %10 = vsyncpa [#allocation6], 0
    %11 = vsyncpa [#allocation4], 0
    // Predicated region
    $region2: #{tpu_custom_call.1} parent=1 // pred_check
      _
    $region3: #{tpu_custom_call.1} parent=1 // pred_check_branch
      %13 = sbr.rel (0) target = $region5
    $region4: #{tpu_custom_call.1} parent=1 // pred_region
      %15 = vsyncadd [#allocation3], 0
      %s17 = sshll.u32 %s0, 4
      %s18 = int_to_ptr.hbm [resolvable:$true] %s17
      %s19 = sshll.u32 [#allocation2], 4
      %s20 = int_to_ptr.vmem [resolvable:$true] %s19
      %22 = dma.hbm_to_vmem [thread:$0]  %s18, 128, %s20, [#allocation3]
    $region5: #{tpu_custom_call.1} parent=1 // pred_fallthru
      _
    // Predicated region
    $region6: #{tpu_custom_call.1} parent=1 // pred_check
      _
    $region7: #{tpu_custom_call.1} parent=1 // pred_check_branch
      %24 = sbr.rel (0) target = $region9
    $region8: #{tpu_custom_call.1} parent=1 // pred_region
      %26 = vsyncadd [#allocation6], 0
      %s27 = sshll.u32 %s1, 4
      %s28 = int_to_ptr.hbm [resolvable:$true] %s27
      %s29 = sshll.u32 [#allocation5], 4
      %s30 = int_to_ptr.vmem [resolvable:$true] %s29
      %35 = dma.hbm_to_vmem [thread:$0]  %s28, 256, %s30, [#allocation6], 128, 128, 8
    $region9: #{tpu_custom_call.1} parent=1 // pred_fallthru
      _
    // Predicated region
    $region10: #{tpu_custom_call.1} parent=1 // pred_check
      _
    $region11: #{tpu_custom_call.1} parent=1 // pred_check_branch
      %37 = sbr.rel (0) target = $region13
    $region12: #{tpu_custom_call.1} parent=1 // pred_region
      _
    $region13: #{tpu_custom_call.1} parent=1 // pred_fallthru
      _
    // Predicated region
    $region14: #{tpu_custom_call.1} parent=1 // pred_check
      _
    $region15: #{tpu_custom_call.1} parent=1 // pred_check_branch
      %39 = sbr.rel (0) target = $region17
    $region16: #{tpu_custom_call.1} parent=1 // pred_region
      _
    $region17: #{tpu_custom_call.1} parent=1 // pred_fallthru
      _
    // Predicated region
    $region18: #{tpu_custom_call.1} parent=1 // pred_check
      _
    $region19: #{tpu_custom_call.1} parent=1 // pred_check_branch
      %41 = sbr.rel (0) target = $region21
    $region20: #{tpu_custom_call.1} parent=1 // pred_region
      %43 = dma.done [#allocation3], 128
    $region21: #{tpu_custom_call.1} parent=1 // pred_fallthru
      _
    // Predicated region
    $region22: #{tpu_custom_call.1} parent=1 // pred_check
      _
    $region23: #{tpu_custom_call.1} parent=1 // pred_check_branch
      %45 = sbr.rel (0) target = $region25
    $region24: #{tpu_custom_call.1} parent=1 // pred_region
      %47 = dma.done [#allocation6], 256
    $region25: #{tpu_custom_call.1} parent=1 // pred_fallthru
      _
    %v48 = vld [vmem:[#allocation2] sm:$0xff]
    %v49 = vld [vmem:[#allocation5] sm:$0xff]
    %v50 = vld [vmem:[#allocation5 + $0x8] sm:$0xff]
    %v51 = vld [vmem:[%s2] sm:$0x1]
    %v53 = vperm.slane %v51, 0
    %vm55 = vcmask 130048
    %v57 = vsel %vm55, %v48, 0
    %59 = vmatpush.msra.mxu0 0.0
    %60 = vmatpush.msra.mxu0 0.0
    %61 = vmatpush.msra.mxu0 0.0
    %62 = vmatpush.msra.mxu0 0.0
    %63 = vmatpush.msra.mxu0 0.0
    %64 = vmatpush.msra.mxu0 0.0
    %65 = vmatpush.msra.mxu0 0.0
    %66 = vmatpush.msra.mxu0 0.0
    %67 = vmatpush.msra.mxu0 0.0
    %68 = vmatpush.msra.mxu0 0.0
    %69 = vmatpush.msra.mxu0 0.0
    %70 = vmatpush.msra.mxu0 0.0
    %71 = vmatpush.msra.mxu0 0.0
    %72 = vmatpush.msra.mxu0 0.0
    %73 = vmatpush.msra.mxu0 %v50
    %74 = vmatpush.msra.mxu0 %v49
    %75 = vmatmul.f32.gmra.mxu0 %v57
    %v76 = vpop.f32.mrf.mxu0
    %v77 = vadd.f32 %v53, %v76
    %78 = vdwg.mxu0
    %v79 = vmax.f32 %v77, 0.0
    %v80 = vld [vmem:[%s3] sm:$0x1]
    %v82 = vperm.slane %v80, 0
    %v84 = vmul.f32 %v79, %v82
    %85 = vadd.xlane.f32.xlu0 %v84
    %v86 = vpop.xlane.xlu0 %85
    %v88 = vlaneseq
    %v89 = vand.u32 %v88, 127
    %v90 = vperm.slane %v86, %v89
    %vm92 = vcmask 57344
    %93 = vst.msk [vmem:[#allocation7] sm:$0x1] %vm92, %v90
    // Predicated region
    $region26: #{tpu_custom_call.1} parent=1 // pred_check
      _
    $region27: #{tpu_custom_call.1} parent=1 // pred_check_branch
      %95 = sbr.rel (0) target = $region29
    $region28: #{tpu_custom_call.1} parent=1 // pred_region
      %97 = vsyncadd [#allocation4], 0
      %s99 = sshll.u32 [#allocation7], 4
      %s100 = int_to_ptr.vmem [resolvable:$true] %s99
      %s101 = sshll.u32 %s4, 4
      %s102 = int_to_ptr.hbm [resolvable:$true] %s101
      %104 = dma.vmem_to_hbm [thread:$0]  %s100, 16, %s102, [#allocation4]
    $region29: #{tpu_custom_call.1} parent=1 // pred_fallthru
      _
    // Predicated region
    $region30: #{tpu_custom_call.1} parent=1 // pred_check
      _
    $region31: #{tpu_custom_call.1} parent=1 // pred_check_branch
      %106 = sbr.rel (0) target = $region33
    $region32: #{tpu_custom_call.1} parent=1 // pred_region
      %108 = dma.done [#allocation4], 16
    $region33: #{tpu_custom_call.1} parent=1 // pred_fallthru
      _
    %109 = vsyncpa [#allocation3], 1
    %110 = vsyncpa [#allocation6], 1
    %111 = vsyncpa [#allocation4], 1

</llo_original>
